<compile_context>
chip_gen: v6e
topology: v6e:2x2x1
jax: 0.10.0
libtpu: 0.0.40
codegen_flags: <defaults>
</compile_context>

<pallas_src>
import functools
import math

import jax
import jax.numpy as jnp
from jax.experimental import pallas as pl
from jax.experimental.pallas import tpu as pltpu


# ----------------------------------------------------------------------------
# Device-aware sizing: v5e/v6e have 128 MiB VMEM per TensorCore, v7x only 64.
# ----------------------------------------------------------------------------
@functools.lru_cache(maxsize=None)
def _device_tiling():
    try:
        vmem_cap = pltpu.get_tpu_info().vmem_capacity_bytes
    except Exception:  # older jax / emulator: fall back to conservative v7x sizing
        vmem_cap = 64 * 1024 * 1024
    if vmem_cap >= 128 * 1024 * 1024:            # v5e / v6e
        return dict(vmem_limit=96 * 1024 * 1024,
                    tm_cap=1024, tn_cap=1024, tk_cap=1024, tq_cap=512)
    # v7x: 64 MiB physical / 32 MiB scoped VMEM -> smaller tiles, and tq small
    # enough that the (B x N/tq) parallel grid keeps both TensorCores busy.
    return dict(vmem_limit=32 * 1024 * 1024,
                tm_cap=512, tn_cap=512, tk_cap=1024, tq_cap=256)


def _pick_tile(dim, cap, align):
    """(8,128)-aware tile pick: the full dim if it fits under `cap`, otherwise the
    largest multiple of `align` that divides `dim` and is <= cap.  Every block is
    therefore either the full dimension or (8,128)-aligned -> unmasked, lane-dense
    loads/stores and no lowering risk for dims like 1152."""
    if dim <= cap:
        return dim
    t = (cap // align) * align
    while t >= align:
        if dim % t == 0:
            return t
        t -= align
    return dim  # no aligned divisor fits the cap; full dim is always legal


# ----------------------------------------------------------------------------
# Tiled linear:  y = x @ w_t + b     (x: (L,Cin) bf16, w_t: (Cin,Cout) bf16)
# ----------------------------------------------------------------------------
def _linear_kernel(x_ref, w_ref, b_ref, o_ref, acc_ref):
    @pl.when(pl.program_id(2) == 0)
    def _():
        acc_ref[...] = jnp.zeros_like(acc_ref)

    acc_ref[...] += jnp.dot(x_ref[...], w_ref[...],
                            preferred_element_type=jnp.float32)

    @pl.when(pl.program_id(2) == pl.num_programs(2) - 1)
    def _():
        o_ref[...] = (acc_ref[...] + b_ref[...]).astype(o_ref.dtype)


def pallas_linear(x2d, w_t, b, *, out_dtype=jnp.bfloat16):
    """x2d: (L, Cin); w_t: (Cin, Cout) pre-transposed; b: (Cout,) f32 -> (L, Cout)."""
    L, Cin = x2d.shape
    Cout = w_t.shape[1]
    cfg = _device_tiling()
    tm = _pick_tile(L, cfg["tm_cap"], 8)        # sublane dim of x / out
    tn = _pick_tile(Cout, cfg["tn_cap"], 128)   # lane dim of w / out
    tk = _pick_tile(Cin, cfg["tk_cap"], 128)    # contraction (lane of x, sublane of w)
    return pl.pallas_call(
        _linear_kernel,
        out_shape=jax.ShapeDtypeStruct((L, Cout), out_dtype),
        grid_spec=pltpu.PrefetchScalarGridSpec(
            num_scalar_prefetch=0,
            grid=(L // tm, Cout // tn, Cin // tk),
            in_specs=[
                pl.BlockSpec((tm, tk), lambda i, j, k: (i, k)),
                pl.BlockSpec((tk, tn), lambda i, j, k: (k, j)),
                pl.BlockSpec((1, tn), lambda i, j, k: (0, j)),
            ],
            out_specs=pl.BlockSpec((tm, tn), lambda i, j, k: (i, j)),
            scratch_shapes=[pltpu.VMEM((tm, tn), jnp.float32)],
        ),
        compiler_params=pltpu.CompilerParams(
            dimension_semantics=("parallel", "parallel", "arbitrary"),
            vmem_limit_bytes=cfg["vmem_limit"],
        ),
    )(x2d, w_t, b.reshape(1, Cout).astype(jnp.float32))


# ----------------------------------------------------------------------------
# Fused masked cross-attention + output projection
#   q  : (B, N, C)  bf16, already scaled by 1/sqrt(head_dim)
#   kv : (B, M, 2C) bf16, per-token layout [k_head0..k_headH-1 | v_head0..v_headH-1]
#   out: (B, N, C)  = proj(softmax(q k^T) v) + bias
# ----------------------------------------------------------------------------
def _attn_proj_kernel(mask_ref, q_ref, kv_ref, wp_ref, bp_ref, o_ref, oh_ref,
                      *, num_heads, head_dim):
    b = pl.program_id(0)
    klen = mask_ref[b]                       # valid key length for this batch row

    q = q_ref[0]                             # (tq, C)  bf16, pre-scaled by 1/sqrt(hd)
    kv = kv_ref[0]                           # (M, 2C)  bf16: [:, :C]=k, [:, C:]=v
    C = num_heads * head_dim
    tq = q.shape[0]
    M = kv.shape[0]

    # Hoisted mask bias: one (tq, M) select shared by all heads.  Finite -1e30 so a
    # fully masked row (klen == 0) softmaxes to uniform instead of NaN.
    key_ids = jax.lax.broadcasted_iota(jnp.int32, (tq, M), 1)
    neg_bias = jnp.where(key_ids < klen, 0.0, -1e30)

    # TODO(synk): for head_dim not a multiple of 128 (OpenSora hd=72), a head-major
    # kv layout or zero-padded head_dim would avoid per-head lane-slice relayouts.
    for h in range(num_heads):               # static unroll over heads
        lo = h * head_dim
        qh = q[:, lo:lo + head_dim]                        # (tq, hd)
        kh = kv[:, lo:lo + head_dim]                       # (M,  hd)
        vh = kv[:, C + lo:C + lo + head_dim]               # (M,  hd)

        # QK^T via dot_general (contract last dims; no in-kernel transpose).
        s = jax.lax.dot_general(qh, kh, (((1,), (1,)), ((), ())),
                                preferred_element_type=jnp.float32)  # (tq, M)
        s = s + neg_bias

        m = jnp.max(s, axis=-1, keepdims=True)
        p = jnp.exp(s - m)
        l = jnp.sum(p, axis=-1, keepdims=True)
        oh = jnp.dot(p.astype(jnp.bfloat16), vh,
                     preferred_element_type=jnp.float32)             # (tq, hd)
        # Normalize AFTER the PV matmul: tq*hd multiplies instead of tq*M,
        # and the reciprocal stays on the EUP slot.
        oh = oh * pl.reciprocal(l, approx=True)
        # Park this head's output in the merged-head VMEM scratch column range
        # (organized spill; no per-head RMW of a live (tq, C) f32 accumulator).
        oh_ref[:, lo:lo + head_dim] = oh.astype(oh_ref.dtype)

    # ONE full-depth (tq, C) @ (C, C) projection matmul after the head loop:
    # K = C keeps the MXU full instead of H matmuls at K = head_dim.
    out = jnp.dot(oh_ref[...], wp_ref[...], preferred_element_type=jnp.float32)
    o_ref[0] = (out + bp_ref[...]).astype(o_ref.dtype)    # lane-dense C-wide store


def pallas_attn_proj(mask_lens, q, kv, wp_t, bp, *, num_heads,
                     out_dtype=jnp.float32):
    B, N, C = q.shape
    M = kv.shape[1]
    head_dim = C // num_heads
    cfg = _device_tiling()
    tq = _pick_tile(N, cfg["tq_cap"], 8)     # query tile (sublane dim)

    kernel = functools.partial(_attn_proj_kernel,
                               num_heads=num_heads, head_dim=head_dim)
    grid_spec = pltpu.PrefetchScalarGridSpec(
        num_scalar_prefetch=1,               # mask_lens -> SMEM
        grid=(B, N // tq),
        in_specs=[
            pl.BlockSpec((1, tq, C), lambda b, qi, m: (b, qi, 0)),
            pl.BlockSpec((1, M, 2 * C), lambda b, qi, m: (b, 0, 0)),
            # wp/bp are grid-invariant; double-buffering them only burns VMEM.
            # TODO(synk): once pipeline_mode=pl.Buffered(1) is reliably supported
            # for top-level pallas_call blocks, single-buffer these two specs.
            pl.BlockSpec((C, C), lambda b, qi, m: (0, 0)),
            pl.BlockSpec((1, C), lambda b, qi, m: (0, 0)),
        ],
        out_specs=pl.BlockSpec((1, tq, C), lambda b, qi, m: (b, qi, 0)),
        scratch_shapes=[pltpu.VMEM((tq, C), jnp.bfloat16)],  # merged-head buffer
    )
    return pl.pallas_call(
        kernel,
        out_shape=jax.ShapeDtypeStruct((B, N, C), out_dtype),
        grid_spec=grid_spec,
        compiler_params=pltpu.CompilerParams(
            # softmax is over the full M per step -> no reduction grid axis; both
            # axes parallel so megacore / v7x dual-TC can shard B x query-tiles.
            dimension_semantics=("parallel", "parallel"),
            vmem_limit_bytes=cfg["vmem_limit"],
        ),
    )(mask_lens, q, kv, wp_t, bp)


# ----------------------------------------------------------------------------
# Module wrapper (parameter prep in plain JAX: one-time transpose / scale / cast)
# ----------------------------------------------------------------------------
def init_params(key, d_model):
    def init_linear(kw, kb, out_f, in_f):
        bound = 1.0 / math.sqrt(in_f)
        w = jax.random.uniform(kw, (out_f, in_f), jnp.float32, -bound, bound)
        b = jax.random.uniform(kb, (out_f,), jnp.float32, -bound, bound)
        return w, b

    ks = jax.random.split(key, 6)
    q_w, q_b = init_linear(ks[0], ks[1], d_model, d_model)
    kv_w, kv_b = init_linear(ks[2], ks[3], 2 * d_model, d_model)
    p_w, p_b = init_linear(ks[4], ks[5], d_model, d_model)
    return dict(q_w=q_w, q_b=q_b, kv_w=kv_w, kv_b=kv_b, p_w=p_w, p_b=p_b)


def opensora_mhca_forward(params, x, cond, T, S, mask_lens, num_heads):
    B, N, C = x.shape
    assert N == T * S, "full-input path only"
    # TODO(synk): QKVCache / token_index partial-decode path not implemented.
    M = cond.shape[1]
    head_dim = C // num_heads
    scale = 1.0 / math.sqrt(head_dim)

    # One-time weight prep: pre-transpose to (Cin, Cout), bake attention scale
    # into the q projection, cast matmul operands to bf16 (f32 accumulation in-kernel).
    wq_t = (params["q_w"].T * scale).astype(jnp.bfloat16)
    bq = params["q_b"] * scale
    wkv_t = params["kv_w"].T.astype(jnp.bfloat16)
    bkv = params["kv_b"]
    wp_t = params["p_w"].T.astype(jnp.bfloat16)
    bp = params["p_b"].reshape(1, C).astype(jnp.float32)

    xb = x.astype(jnp.bfloat16).reshape(B * N, C)
    cb = cond.astype(jnp.bfloat16).reshape(B * M, C)

    # Projections (tiled, pipelined Pallas matmuls); outputs stay bf16 in HBM.
    # TODO(synk): optionally fuse the q projection into the attention kernel to
    # save the (B,N,C) bf16 round trip when the fused kernel is memory-bound.
    q = pallas_linear(xb, wq_t, bq).reshape(B, N, C)          # pre-scaled q
    kv = pallas_linear(cb, wkv_t, bkv).reshape(B, M, 2 * C)   # [:, :, :C]=k, [:, :, C:]=v

    # Fused masked cross-attention + output projection (attn/proj dropout = identity
    # at eval).  Output dtype follows x (f32 here, matching the PyTorch module).
    out = pallas_attn_proj(mask_lens, q, kv, wp_t, bp,
                           num_heads=num_heads, out_dtype=x.dtype)
    return out                                                 # (B, N, C)


# ----------------------------------------------------------------------------
# Pure-JAX f32 reference (for correctness check)
# ----------------------------------------------------------------------------
def reference_forward(params, x, cond, mask_lens, num_heads):
    B, N, C = x.shape
    M = cond.shape[1]
    H = num_heads
    hd = C // H
    q = x @ params["q_w"].T + params["q_b"]
    kv = cond @ params["kv_w"].T + params["kv_b"]
    q = q.reshape(B, N, H, hd).transpose(0, 2, 1, 3)
    kv = kv.reshape(B, M, 2, H, hd)
    k = kv[:, :, 0].transpose(0, 2, 1, 3)
    v = kv[:, :, 1].transpose(0, 2, 1, 3)
    s = jnp.einsum("bhnd,bhmd->bhnm", q, k) / math.sqrt(hd)
    key_ids = jnp.arange(M)[None, None, None, :]
    s = jnp.where(key_ids < mask_lens[:, None, None, None], s, -jnp.inf)
    p = jax.nn.softmax(s, axis=-1)
    o = jnp.einsum("bhnm,bhmd->bhnd", p, v)
    o = o.transpose(0, 2, 1, 3).reshape(B, N, C)
    return o @ params["p_w"].T + params["p_b"]


# ----------------------------------------------------------------------------
if __name__ == "__main__":
    B = 2
    T, S = 2, 16            # N = T * S = 32 query tokens
    N = T * S
    C = 32                  # d_model
    H = 4                   # num_heads -> head_dim = 8
    M = 16                  # conditioning tokens per batch element

    key = jax.random.PRNGKey(0)
    kp, kx, kc = jax.random.split(key, 3)
    params = init_params(kp, C)

    x = jax.random.normal(kx, (B, N, C), jnp.float32)
    cond = jax.random.normal(kc, (B, M, C), jnp.float32)
    mask_lens = jnp.array([16, 9], dtype=jnp.int32)   # valid key lengths per batch

    out = opensora_mhca_forward(params, x, cond, T, S, mask_lens, H)
    out = jax.block_until_ready(out)

    ref = reference_forward(params, x, cond, mask_lens, H)
    assert out.shape == (B, N, C)
    max_err = float(jnp.max(jnp.abs(out - ref)))
    assert jnp.allclose(out, ref, atol=5e-2, rtol=5e-2), (
        f"mismatch vs reference (max abs err {max_err})"
    )

    print("KERNEL_OK")
</pallas_src>

<mosaic_0001>
module attributes {stable_mosaic.version = 11 : i64} {
  func.func @_linear_kernel(%arg0: i32, %arg1: i32, %arg2: i32, %arg3: memref<64x32xbf16, #tpu.memory_space<vmem>>, %arg4: memref<32x32xbf16, #tpu.memory_space<vmem>>, %arg5: memref<1x32xf32, #tpu.memory_space<vmem>>, %arg6: memref<64x32xbf16, #tpu.memory_space<vmem>>, %arg7: memref<64x32xf32, #tpu.memory_space<vmem>>) attributes {dimension_semantics = [#tpu.dimension_semantics<parallel>, #tpu.dimension_semantics<parallel>, #tpu.dimension_semantics<arbitrary>], iteration_bounds = array<i64: 1, 1, 1>, scalar_prefetch = 0 : i64, scratch_operands = 1 : i64, tpu.core_type = #tpu.core_type<tc>, window_params = [{transform_indices = @transform_0, window_bounds = array<i64: 64, 32>}, {transform_indices = @transform_1, window_bounds = array<i64: 32, 32>}, {transform_indices = @transform_2, window_bounds = array<i64: 1, 32>}, {transform_indices = @transform_3, window_bounds = array<i64: 64, 32>}]} {
    %c0_i32 = arith.constant 0 : i32
    %0 = arith.cmpi eq, %arg2, %c0_i32 : i32
    %1 = arith.extui %0 : i1 to i32
    %c0_i32_0 = arith.constant 0 : i32
    %2 = arith.cmpi ne, %1, %c0_i32_0 : i32
    scf.if %2 {
      %cst_10 = arith.constant 0.000000e+00 : f32
      %12 = vector.broadcast %cst_10 : f32 to vector<64x32xf32>
      %c0_11 = arith.constant 0 : index
      %c0_12 = arith.constant 0 : index
      %13 = vector.load %arg7[%c0_11, %c0_12] : memref<64x32xf32, #tpu.memory_space<vmem>>, vector<64x32xf32>
      tpu.vector_store %arg7[%c0_11, %c0_12], %12 {strides = array<i32>} : memref<64x32xf32, #tpu.memory_space<vmem>>, vector<64x32xf32>,
    } else {
    }
    %c0 = arith.constant 0 : index
    %c0_1 = arith.constant 0 : index
    %3 = vector.load %arg7[%c0, %c0_1] : memref<64x32xf32, #tpu.memory_space<vmem>>, vector<64x32xf32>
    %c0_2 = arith.constant 0 : index
    %c0_3 = arith.constant 0 : index
    %4 = vector.load %arg3[%c0_2, %c0_3] : memref<64x32xbf16, #tpu.memory_space<vmem>>, vector<64x32xbf16>
    %c0_4 = arith.constant 0 : index
    %c0_5 = arith.constant 0 : index
    %5 = vector.load %arg4[%c0_4, %c0_5] : memref<32x32xbf16, #tpu.memory_space<vmem>>, vector<32x32xbf16>
    %cst = arith.constant dense<0.000000e+00> : vector<64x32xf32>
    %6 = tpu.matmul %4, %5, %cst {dimension_numbers = #tpu.dot_dimension_numbers<[1], [0], [0], [1], [0, 0, 1, 1], [], []>} : vector<64x32xbf16>, vector<32x32xbf16>, vector<64x32xf32> -> vector<64x32xf32>
    %7 = arith.addf %3, %6 : vector<64x32xf32>
    %c0_6 = arith.constant 0 : index
    %c0_7 = arith.constant 0 : index
    %8 = vector.load %arg7[%c0_6, %c0_7] : memref<64x32xf32, #tpu.memory_space<vmem>>, vector<64x32xf32>
    tpu.vector_store %arg7[%c0_6, %c0_7], %7 {strides = array<i32>} : memref<64x32xf32, #tpu.memory_space<vmem>>, vector<64x32xf32>,
    %c0_i32_8 = arith.constant 0 : i32
    %9 = arith.cmpi eq, %arg2, %c0_i32_8 : i32
    %10 = arith.extui %9 : i1 to i32
    %c0_i32_9 = arith.constant 0 : i32
    %11 = arith.cmpi ne, %10, %c0_i32_9 : i32
    scf.if %11 {
      %c0_10 = arith.constant 0 : index
      %c0_11 = arith.constant 0 : index
      %12 = vector.load %arg7[%c0_10, %c0_11] : memref<64x32xf32, #tpu.memory_space<vmem>>, vector<64x32xf32>
      %c0_12 = arith.constant 0 : index
      %c0_13 = arith.constant 0 : index
      %13 = vector.load %arg5[%c0_12, %c0_13] : memref<1x32xf32, #tpu.memory_space<vmem>>, vector<1x32xf32>
      %14 = vector.broadcast %13 : vector<1x32xf32> to vector<64x32xf32>
      %15 = arith.addf %12, %14 : vector<64x32xf32>
      %16 = arith.truncf %15 : vector<64x32xf32> to vector<64x32xbf16>
      %c0_14 = arith.constant 0 : index
      %c0_15 = arith.constant 0 : index
      %17 = vector.load %arg6[%c0_14, %c0_15] : memref<64x32xbf16, #tpu.memory_space<vmem>>, vector<64x32xbf16>
      tpu.vector_store %arg6[%c0_14, %c0_15], %16 {strides = array<i32>} : memref<64x32xbf16, #tpu.memory_space<vmem>>, vector<64x32xbf16>,
    } else {
    }
    return
  }
  func.func @transform_0(%arg0: i32, %arg1: i32, %arg2: i32) -> (i32, i32) {
    %c0_i32 = arith.constant 0 : i32
    return %arg0, %arg2 : i32, i32
  }
  func.func @transform_1(%arg0: i32, %arg1: i32, %arg2: i32) -> (i32, i32) {
    %c0_i32 = arith.constant 0 : i32
    return %arg2, %arg1 : i32, i32
  }
  func.func @transform_2(%arg0: i32, %arg1: i32, %arg2: i32) -> (i32, i32) {
    %c0_i32 = arith.constant 0 : i32
    %c0_i32_0 = arith.constant 0 : i32
    return %c0_i32, %arg1 : i32, i32
  }
  func.func @transform_3(%arg0: i32, %arg1: i32, %arg2: i32) -> (i32, i32) {
    %c0_i32 = arith.constant 0 : i32
    return %arg0, %arg1 : i32, i32
  }
}

</mosaic_0001>

<llo_original>
// kernel: tpu_custom_call.1
$region0: #{tpu_custom_call.1}
  #allocation0 [shape = 'u32[]', space=smem, size = 0x4, offset = 0x4, fixed_abs, tag = 'smem constant byte address 0x4 - core index']
  #allocation1 [shape = 'u32[144,128]{1,0:T(1,128)}', space=vmem, size = 0x12000, scoped, tag = 'internal scratch']
  #allocation2 [shape = 'f32[64,32]{1,0:T(8,128)}', space=vmem, size = 0x8000, scoped, tag = 'scratch operand']
  %s0 = inlined_call_operand.vmem [shape: bf16[64,32], index: 0, kind: input, shape index: {}]
  %s1 = inlined_call_operand.vmem [shape: bf16[32,32], index: 1, kind: input, shape index: {}]
  %s2 = inlined_call_operand.vmem [shape: f32[1,32], index: 2, kind: input, shape index: {}]
  %s3 = inlined_call_operand.vmem [shape: bf16[64,32], index: 3, kind: output, shape index: {}]
  %s4 = sld [smem:[#allocation0]]
  $region30: #{tpu_custom_call.1} parent=0
    _
  %s6 = ssub.s32 1, %s4
  %s7 = scalar_select 0, %s6, %s4
  // Predicated region
  $region2: #{tpu_custom_call.1} parent=0 // pred_check
    _
  $region3: #{tpu_custom_call.1} parent=0 // pred_check_branch
    %9 = sbr.rel (0) target = $region5
  $region4: #{tpu_custom_call.1} parent=0 // pred_region
    _
  $region5: #{tpu_custom_call.1} parent=0 // pred_fallthru
    _
  // Predicated region
  $region6: #{tpu_custom_call.1} parent=0 // pred_check
    _
  $region7: #{tpu_custom_call.1} parent=0 // pred_check_branch
    %11 = sbr.rel (0) target = $region9
  $region8: #{tpu_custom_call.1} parent=0 // pred_region
    _
  $region9: #{tpu_custom_call.1} parent=0 // pred_fallthru
    _
  // Predicated region
  $region10: #{tpu_custom_call.1} parent=0 // pred_check
    _
  $region11: #{tpu_custom_call.1} parent=0 // pred_check_branch
    %13 = sbr.rel (0) target = $region13
  $region12: #{tpu_custom_call.1} parent=0 // pred_region
    _
  $region13: #{tpu_custom_call.1} parent=0 // pred_fallthru
    _
  %p15 = scmp.eq.s32.totalorder 0, 0
  // Predicated region
  $region14: #{tpu_custom_call.1} parent=0 // pred_check
    %p16 = pneg %p15
  $region15: #{tpu_custom_call.1} parent=0 // pred_check_branch
    %18 = sbr.rel (%p16) target = $region17
  $region16: #{tpu_custom_call.1} parent=0 // pred_region
    %vm19 = vcmask 261120
    %20 = vst.msk [vmem:[#allocation2] sm:$0xff] %vm19, 0.0
    %21 = vst.msk [vmem:[#allocation2 + $0x8] sm:$0xff] %vm19, 0.0
    %22 = vst.msk [vmem:[#allocation2 + $0x10] sm:$0xff] %vm19, 0.0
    %23 = vst.msk [vmem:[#allocation2 + $0x18] sm:$0xff] %vm19, 0.0
    %24 = vst.msk [vmem:[#allocation2 + $0x20] sm:$0xff] %vm19, 0.0
    %25 = vst.msk [vmem:[#allocation2 + $0x28] sm:$0xff] %vm19, 0.0
    %26 = vst.msk [vmem:[#allocation2 + $0x30] sm:$0xff] %vm19, 0.0
    %27 = vst.msk [vmem:[#allocation2 + $0x38] sm:$0xff] %vm19, 0.0
  $region17: #{tpu_custom_call.1} parent=0 // pred_fallthru
    _
  %v28 = vld [vmem:[#allocation2] sm:$0xff]
  %v29 = vld [vmem:[#allocation2 + $0x8] sm:$0xff]
  %v30 = vld [vmem:[#allocation2 + $0x10] sm:$0xff]
  %v31 = vld [vmem:[#allocation2 + $0x18] sm:$0xff]
  %v32 = vld [vmem:[#allocation2 + $0x20] sm:$0xff]
  %v33 = vld [vmem:[#allocation2 + $0x28] sm:$0xff]
  %v34 = vld [vmem:[#allocation2 + $0x30] sm:$0xff]
  %v35 = vld [vmem:[#allocation2 + $0x38] sm:$0xff]
  %v36 = vld [vmem:[%s0] sm:$0xf]
  %v37 = vld [vmem:[%s0 + $0x4] sm:$0xf]
  %v38 = vld [vmem:[%s0 + $0x8] sm:$0xf]
  %v39 = vld [vmem:[%s0 + $0xc] sm:$0xf]
  %v40 = vld [vmem:[%s0 + $0x10] sm:$0xf]
  %v41 = vld [vmem:[%s0 + $0x14] sm:$0xf]
  %v42 = vld [vmem:[%s0 + $0x18] sm:$0xf]
  %v43 = vld [vmem:[%s0 + $0x1c] sm:$0xf]
  %v44 = vld [vmem:[%s1] sm:$0xf]
  %v45 = vld [vmem:[%s1 + $0x4] sm:$0xf]
  %v46 = vld [vmem:[%s1 + $0x8] sm:$0xf]
  %v47 = vld [vmem:[%s1 + $0xc] sm:$0xf]
  %v56 = vunpack.c.l.b16 %v36
  %v57 = vunpack.c.l.b16 %v37
  %v58 = vunpack.c.l.b16 %v38
  %v59 = vunpack.c.l.b16 %v39
  %v60 = vunpack.c.l.b16 %v40
  %v61 = vunpack.c.l.b16 %v41
  %v62 = vunpack.c.l.b16 %v42
  %v63 = vunpack.c.l.b16 %v43
  %v64 = vpack.c.b16 %v57, %v56
  %v65 = vpack.c.b16 %v59, %v58
  %v66 = vpack.c.b16 %v61, %v60
  %v67 = vpack.c.b16 %v63, %v62
  %v72 = vunpack.c.l.b16 %v44
  %v73 = vunpack.c.l.b16 %v45
  %v74 = vunpack.c.l.b16 %v46
  %v75 = vunpack.c.l.b16 %v47
  %v76 = vpack.c.b16 %v73, %v72
  %v77 = vpack.c.b16 %v75, %v74
  %vm80 = vcmask 261120
  %v82 = vsel %vm80, %v64, 0
  %v85 = vsel %vm80, %v65, 0
  %v88 = vsel %vm80, %v66, 0
  %v91 = vsel %vm80, %v67, 0
  %93 = vmatprep.subr.bf16.mxu0 0
  %94 = vmatpush1.bf16.msra.mxu0 0
  %95 = vmatprep.subr.bf16.mxu0 0
  %96 = vmatpush1.bf16.msra.mxu0 0
  %97 = vmatprep.subr.bf16.mxu0 0
  %98 = vmatpush1.bf16.msra.mxu0 0
  %99 = vmatprep.subr.bf16.mxu0 0
  %100 = vmatpush1.bf16.msra.mxu0 0
  %101 = vmatprep.subr.bf16.mxu0 0
  %102 = vmatpush1.bf16.msra.mxu0 0
  %103 = vmatprep.subr.bf16.mxu0 0
  %104 = vmatpush1.bf16.msra.mxu0 0
  %105 = vmatprep.subr.bf16.mxu0 0
  %106 = vmatpush1.bf16.msra.mxu0 %v77
  %107 = vmatprep.subr.bf16.mxu0 0
  %108 = vmatpush1.bf16.msra.mxu0 %v76
  %109 = vmatprep.subr.bf16.mxu0 0
  %110 = vmatpush2.bf16.msra.mxu0 0
  %111 = vmatprep.subr.bf16.mxu0 0
  %112 = vmatpush2.bf16.msra.mxu0 0
  %113 = vmatprep.subr.bf16.mxu0 0
  %114 = vmatpush2.bf16.msra.mxu0 0
  %115 = vmatprep.subr.bf16.mxu0 0
  %116 = vmatpush2.bf16.msra.mxu0 0
  %117 = vmatprep.subr.bf16.mxu0 0
  %118 = vmatpush2.bf16.msra.mxu0 0
  %119 = vmatprep.subr.bf16.mxu0 0
  %120 = vmatpush2.bf16.msra.mxu0 0
  %121 = vmatprep.subr.bf16.mxu0 0
  %122 = vmatpush2.bf16.msra.mxu0 0
  %123 = vmatprep.subr.bf16.mxu0 0
  %124 = vmatpush2.bf16.msra.mxu0 0
  %125 = vmatprep.mubr.bf16.mxu0 0
  %126 = vmatmul.mubr.bf16.gmra.mxu0 %v82
  %v127 = vpop.f32.mrf.mxu0
  %v128 = vadd.f32 0.0, %v127
  %v129 = vpop.f32.mrf.mxu0
  %v130 = vpop.f32.mrf.mxu0
  %v131 = vadd.f32 0.0, %v130
  %v132 = vpop.f32.mrf.mxu0
  %133 = vmatprep.mubr.bf16.mxu0 0
  %134 = vmatmul.mubr.bf16.gmra.mxu0 %v85
  %v135 = vpop.f32.mrf.mxu0
  %v136 = vadd.f32 0.0, %v135
  %v137 = vpop.f32.mrf.mxu0
  %v138 = vpop.f32.mrf.mxu0
  %v139 = vadd.f32 0.0, %v138
  %v140 = vpop.f32.mrf.mxu0
  %141 = vmatprep.mubr.bf16.mxu0 0
  %142 = vmatmul.mubr.bf16.gmra.mxu0 %v88
  %v143 = vpop.f32.mrf.mxu0
  %v144 = vadd.f32 0.0, %v143
  %v145 = vpop.f32.mrf.mxu0
  %v146 = vpop.f32.mrf.mxu0
  %v147 = vadd.f32 0.0, %v146
  %v148 = vpop.f32.mrf.mxu0
  %149 = vmatprep.mubr.bf16.mxu0 0
  %150 = vmatmul.mubr.bf16.gmra.mxu0 %v91
  %v151 = vpop.f32.mrf.mxu0
  %v152 = vadd.f32 0.0, %v151
  %v153 = vpop.f32.mrf.mxu0
  %v154 = vpop.f32.mrf.mxu0
  %v155 = vadd.f32 0.0, %v154
  %v156 = vpop.f32.mrf.mxu0
  %157 = vdwg.mxu0
  %v158 = vadd.f32 %v28, %v128
  %v159 = vadd.f32 %v29, %v131
  %v160 = vadd.f32 %v30, %v136
  %v161 = vadd.f32 %v31, %v139
  %v162 = vadd.f32 %v32, %v144
  %v163 = vadd.f32 %v33, %v147
  %v164 = vadd.f32 %v34, %v152
  %v165 = vadd.f32 %v35, %v155
  %166 = vst.msk [vmem:[#allocation2] sm:$0xff] %vm80, %v158
  %167 = vst.msk [vmem:[#allocation2 + $0x8] sm:$0xff] %vm80, %v159
  %168 = vst.msk [vmem:[#allocation2 + $0x10] sm:$0xff] %vm80, %v160
  %169 = vst.msk [vmem:[#allocation2 + $0x18] sm:$0xff] %vm80, %v161
  %170 = vst.msk [vmem:[#allocation2 + $0x20] sm:$0xff] %vm80, %v162
  %171 = vst.msk [vmem:[#allocation2 + $0x28] sm:$0xff] %vm80, %v163
  %172 = vst.msk [vmem:[#allocation2 + $0x30] sm:$0xff] %vm80, %v164
  %173 = vst.msk [vmem:[#allocation2 + $0x38] sm:$0xff] %vm80, %v165
  // Predicated region
  $region18: #{tpu_custom_call.1} parent=0 // pred_check
    %p174 = pneg %p15
  $region19: #{tpu_custom_call.1} parent=0 // pred_check_branch
    %176 = sbr.rel (%p174) target = $region21
  $region20: #{tpu_custom_call.1} parent=0 // pred_region
    %v177 = vld [vmem:[#allocation2] sm:$0xff]
    %v178 = vld [vmem:[#allocation2 + $0x8] sm:$0xff]
    %v179 = vld [vmem:[#allocation2 + $0x10] sm:$0xff]
    %v180 = vld [vmem:[#allocation2 + $0x18] sm:$0xff]
    %v181 = vld [vmem:[#allocation2 + $0x20] sm:$0xff]
    %v182 = vld [vmem:[#allocation2 + $0x28] sm:$0xff]
    %v183 = vld [vmem:[#allocation2 + $0x30] sm:$0xff]
    %v184 = vld [vmem:[#allocation2 + $0x38] sm:$0xff]
    %v185 = vld [vmem:[%s2] sm:$0x1]
    %v187 = vlaneseq
    %v188 = vshrl.u32 %v187, 7
    %v189 = vsub.s32 0, %v188
    %v190 = vrot.slane %v185, %v189
    %v192 = vadd.f32 %v177, %v190
    %v193 = vadd.f32 %v178, %v190
    %v194 = vadd.f32 %v179, %v190
    %v195 = vadd.f32 %v180, %v190
    %v196 = vadd.f32 %v181, %v190
    %v197 = vadd.f32 %v182, %v190
    %v198 = vadd.f32 %v183, %v190
    %v199 = vadd.f32 %v184, %v190
    %v200 = vpack.c.bf16 %v193, %v192
    %v201 = vpack.c.bf16 %v195, %v194
    %v202 = vpack.c.bf16 %v197, %v196
    %v203 = vpack.c.bf16 %v199, %v198
    %v208 = vunpack.c.l.b16 %v200
    %v209 = vunpack.c.h.b16 %v200
    %v210 = vunpack.c.l.b16 %v201
    %v211 = vunpack.c.h.b16 %v201
    %v212 = vunpack.c.l.b16 %v202
    %v213 = vunpack.c.h.b16 %v202
    %v214 = vunpack.c.l.b16 %v203
    %v215 = vunpack.c.h.b16 %v203
    %v216 = vpack.c.b16 %v208, %v208
    %v217 = vpack.c.b16 %v209, %v209
    %v218 = vpack.c.b16 %v210, %v210
    %v219 = vpack.c.b16 %v211, %v211
    %v220 = vpack.c.b16 %v212, %v212
    %v221 = vpack.c.b16 %v213, %v213
    %v222 = vpack.c.b16 %v214, %v214
    %v223 = vpack.c.b16 %v215, %v215
    %vm232 = vcmask 257024
    %233 = vst.msk [vmem:[%s3] sm:$0xf] %vm232, %v216
    %234 = vst.msk [vmem:[%s3 + $0x4] sm:$0xf] %vm232, %v217
    %235 = vst.msk [vmem:[%s3 + $0x8] sm:$0xf] %vm232, %v218
    %236 = vst.msk [vmem:[%s3 + $0xc] sm:$0xf] %vm232, %v219
    %237 = vst.msk [vmem:[%s3 + $0x10] sm:$0xf] %vm232, %v220
    %238 = vst.msk [vmem:[%s3 + $0x14] sm:$0xf] %vm232, %v221
    %239 = vst.msk [vmem:[%s3 + $0x18] sm:$0xf] %vm232, %v222
    %240 = vst.msk [vmem:[%s3 + $0x1c] sm:$0xf] %vm232, %v223
  $region21: #{tpu_custom_call.1} parent=0 // pred_fallthru
    _
  // Predicated region
  $region22: #{tpu_custom_call.1} parent=0 // pred_check
    _
  $region23: #{tpu_custom_call.1} parent=0 // pred_check_branch
    %242 = sbr.rel (0) target = $region25
  $region24: #{tpu_custom_call.1} parent=0 // pred_region
    _
  $region25: #{tpu_custom_call.1} parent=0 // pred_fallthru
    _
  // Predicated region
  $region26: #{tpu_custom_call.1} parent=0 // pred_check
    _
  $region27: #{tpu_custom_call.1} parent=0 // pred_check_branch
    %244 = sbr.rel (0) target = $region29
  $region28: #{tpu_custom_call.1} parent=0 // pred_region
    _
  $region29: #{tpu_custom_call.1} parent=0 // pred_fallthru
    _

</llo_original>
